<compile_context>
chip_gen: v5e
topology: v5e:2x2
jax: 0.10.0
libtpu: 0.0.40
codegen_flags: <defaults>
</compile_context>

<pallas_src>
import functools

import jax
import jax.numpy as jnp
from jax.experimental import pallas as pl
from jax.experimental.pallas import tpu as pltpu


def _linear_vpu(w, b, x):
    """Channel-major per-pixel linear layer: (Co,Ci) @ (Ci,tn) + (Co,1).

    Ci is tiny (3 here), so the contraction is an unrolled VPU broadcast-FMA
    chain; a (tn,Ci)x(Ci,Co) MXU matmul would leave >97% of the systolic array
    idle and pay push/drain latency per tile.
    """
    ci = w.shape[1]
    acc = w[:, 0:1] * x[0:1, :]
    for k in range(1, ci):
        acc = acc + w[:, k:k + 1] * x[k:k + 1, :]
    return acc + b


def _vae_kernel(
    x_ref, eps_ref,
    w_xm_ref, b_xm_ref,        # folded x -> mean
    w_xl_ref, b_xl_ref,        # folded x -> logvar
    w_zd_ref, b_zd_ref,        # folded z -> decoded (pre-sigmoid)
    recon_ref, mean_ref, logvar_ref, l1_ref, kl_ref,
):
    x = x_ref[0]          # (C_in, tile_n)   pixels on lanes, channels on sublanes
    eps = eps_ref[0]      # (L,    tile_n)

    # TODO(synk): ConditionalUNet.encode is not defined in the provided source;
    # it is a linear 1x1 stand-in that has been folded into w_xm / w_xl below.
    mean = _linear_vpu(w_xm_ref[...], b_xm_ref[...], x)       # (L, tile_n)
    logvar = _linear_vpu(w_xl_ref[...], b_xl_ref[...], x)     # (L, tile_n)

    # reparameterization:  z = mean + exp(0.5 * logvar) * eps
    # Single EUP exp per element; std*std is reused as exp(logvar) in the KL.
    # TODO(synk): eps could be generated in-kernel (pltpu.prng_seed +
    # pltpu.stateful_normal) to cut the eps HBM read; kept external so the
    # noise stream stays deterministic / externally controlled (randn_like).
    std = jnp.exp(logvar * 0.5)
    z = mean + std * eps

    # decode_projection + decoder stand-in (folded), then out_sigmoid.
    # TODO(synk): ConditionalUNet.decode is not defined in the provided source;
    # it is a linear 1x1 stand-in folded into w_zd.
    recon = jax.nn.sigmoid(_linear_vpu(w_zd_ref[...], b_zd_ref[...], z))

    recon_ref[0] = recon
    mean_ref[0] = mean
    logvar_ref[0] = logvar

    # Per-program partial loss sums, written as lane-dense (8,128) slabs so no
    # block is ever revisited and the grid stays fully "parallel".
    l1 = jnp.sum(jnp.abs(x - recon))
    kl = jnp.sum(-0.5 * (1.0 + logvar - mean * mean - std * std))
    l1_ref[...] = jnp.full(l1_ref.shape, l1, dtype=jnp.float32)
    kl_ref[...] = jnp.full(kl_ref.shape, kl, dtype=jnp.float32)


@functools.partial(jax.jit, static_argnames=("tile_n",))
def vae_forward(x_nchw, eps_nchw, params, *, tile_n=8192):
    """Full-mode forward of VariationalAutoEncoder (use_GAN=False).

    x_nchw:   (B, C_in, H, W)   image
    eps_nchw: (B, latent, H, W) reparameterization noise (== torch.randn_like(mean))
    Returns (recon_x [NCHW], mean [NCHW latent], logvar, loss, log).
    """
    B, C_in, H, W = x_nchw.shape
    HW = H * W
    latent = params["w_mean"].shape[0]
    c_out = params["w_dec"].shape[0]
    assert c_out == C_in, "L1 recon loss requires output_chann == image_chann"

    tile_n = min(tile_n, HW)
    assert HW % tile_n == 0, "H*W must be divisible by tile_n"
    assert tile_n % 128 == 0 or tile_n == HW, "tile_n should be lane-aligned"
    n_tiles = HW // tile_n

    f32 = jnp.float32
    hp = jax.lax.Precision.HIGHEST

    # Channel-major views, no transposes (contiguous reshapes only).
    x = x_nchw.reshape(B, C_in, HW).astype(f32)
    eps = eps_nchw.reshape(B, latent, HW).astype(f32)

    # ---- fold consecutive linear stages offline (tiny matrices) ----
    # TODO(synk): this folding is only valid while ConditionalUNet.encode /
    # decode are the linear 1x1 stand-ins; revert to separate stages once the
    # real (nonlinear) UNet is substituted.
    w_enc, b_enc = params["w_enc"].astype(f32), params["b_enc"].astype(f32)
    w_xm = jnp.dot(params["w_mean"].astype(f32), w_enc, precision=hp)
    b_xm = jnp.dot(params["w_mean"].astype(f32), b_enc, precision=hp) + params["b_mean"].astype(f32)
    w_xl = jnp.dot(params["w_logvar"].astype(f32), w_enc, precision=hp)
    b_xl = jnp.dot(params["w_logvar"].astype(f32), b_enc, precision=hp) + params["b_logvar"].astype(f32)
    w_zd = jnp.dot(params["w_dec"].astype(f32), params["w_dp"].astype(f32), precision=hp)
    b_zd = jnp.dot(params["w_dec"].astype(f32), params["b_dp"].astype(f32), precision=hp) \
        + params["b_dec"].astype(f32)

    # Constant index_map -> the tiny weight blocks are DMA'd once and stay
    # resident in VMEM for the whole grid.
    full2d = lambda shape: pl.BlockSpec(shape, lambda b, n: (0, 0))
    pix = lambda c: pl.BlockSpec((1, c, tile_n), lambda b, n: (b, 0, n))
    part = pl.BlockSpec((1, 1, 8, 128), lambda b, n: (b, n, 0, 0))

    recon, mean, logvar, l1_parts, kl_parts = pl.pallas_call(
        _vae_kernel,
        grid=(B, n_tiles),
        in_specs=[
            pix(C_in),                               # x
            pix(latent),                             # eps
            full2d((latent, C_in)), full2d((latent, 1)),   # x -> mean
            full2d((latent, C_in)), full2d((latent, 1)),   # x -> logvar
            full2d((c_out, latent)), full2d((c_out, 1)),   # z -> decoded
        ],
        out_specs=[
            pix(c_out),                              # recon
            pix(latent),                             # mean
            pix(latent),                             # logvar
            part,                                    # L1 partial sums
            part,                                    # KL partial sums
        ],
        out_shape=[
            jax.ShapeDtypeStruct((B, c_out, HW), f32),
            jax.ShapeDtypeStruct((B, latent, HW), f32),
            jax.ShapeDtypeStruct((B, latent, HW), f32),
            jax.ShapeDtypeStruct((B, n_tiles, 8, 128), f32),
            jax.ShapeDtypeStruct((B, n_tiles, 8, 128), f32),
        ],
        compiler_params=pltpu.CompilerParams(
            dimension_semantics=("parallel", "parallel")),
    )(x, eps, w_xm, b_xm, w_xl, b_xl, w_zd, b_zd)

    # Back to NCHW — free reshapes, no transposes.
    recon_nchw = recon.reshape(B, c_out, H, W)
    mean_nchw = mean.reshape(B, latent, H, W)
    logvar_nchw = logvar.reshape(B, latent, H, W)

    # ---- loss assembly (scalar glue; matches get_loss with use_GAN=False) ----
    reg = params["recon_loss_regulizer"].astype(f32)   # nn.Parameter(zeros(())) -> 0.0
    l1_total = jnp.sum(l1_parts[:, :, 0, 0])
    kl_total = jnp.sum(kl_parts[:, :, 0, 0])
    numel = B * c_out * HW                             # elements of the nll tensor
    # TODO(synk): LPIPS perceptual loss needs a pretrained VGG net; omitted here.
    nll_loss = (l1_total / jnp.exp(reg) + reg * numel) / B
    kl_loss = (kl_total / B) * 0.01
    loss = nll_loss + kl_loss
    log = {"loss:": loss, "nll loss:": nll_loss, "kl_loss:": kl_loss}
    return recon_nchw, mean_nchw, logvar_nchw, loss, log


def init_params(key, *, image_chann=3, encoded_c=32, latent_chann=3, output_chann=3):
    """Channel-major weights: every 1x1 conv is stored as (C_out, C_in), bias (C_out, 1)."""
    ks = jax.random.split(key, 5)
    scale = 0.1
    return {
        "w_enc": scale * jax.random.normal(ks[0], (encoded_c, image_chann), jnp.float32),
        "b_enc": jnp.zeros((encoded_c, 1), jnp.float32),
        # mean_logvar conv weight split into its two chunked halves
        "w_mean": scale * jax.random.normal(ks[1], (latent_chann, encoded_c), jnp.float32),
        "b_mean": jnp.zeros((latent_chann, 1), jnp.float32),
        "w_logvar": scale * jax.random.normal(ks[2], (latent_chann, encoded_c), jnp.float32),
        "b_logvar": jnp.zeros((latent_chann, 1), jnp.float32),
        "w_dp": scale * jax.random.normal(ks[3], (encoded_c, latent_chann), jnp.float32),
        "b_dp": jnp.zeros((encoded_c, 1), jnp.float32),
        "w_dec": scale * jax.random.normal(ks[4], (output_chann, encoded_c), jnp.float32),
        "b_dec": jnp.zeros((output_chann, 1), jnp.float32),
        "recon_loss_regulizer": jnp.zeros((), jnp.float32),
    }


def _reference_forward(x_nchw, eps_nchw, params):
    """Pure-JAX un-folded reference for correctness checking."""
    B, C, H, W = x_nchw.shape
    hp = jax.lax.Precision.HIGHEST
    latent = params["w_mean"].shape[0]
    c_out = params["w_dec"].shape[0]
    x = x_nchw.reshape(B, C, H * W).astype(jnp.float32)
    eps = eps_nchw.reshape(B, latent, H * W).astype(jnp.float32)
    lin = lambda w, b, v: jnp.einsum("oc,bcn->bon", w, v, precision=hp) + b[None]
    enc = lin(params["w_enc"], params["b_enc"], x)
    mean = lin(params["w_mean"], params["b_mean"], enc)
    logvar = lin(params["w_logvar"], params["b_logvar"], enc)
    z = mean + jnp.exp(logvar * 0.5) * eps
    proj = lin(params["w_dp"], params["b_dp"], z)
    recon = jax.nn.sigmoid(lin(params["w_dec"], params["b_dec"], proj))
    l1 = jnp.sum(jnp.abs(x - recon))
    kl = jnp.sum(-0.5 * (1.0 + logvar - mean * mean - jnp.exp(logvar)))
    reg = params["recon_loss_regulizer"]
    numel = B * c_out * H * W
    nll = (l1 / jnp.exp(reg) + reg * numel) / B
    loss = nll + (kl / B) * 0.01
    return (recon.reshape(B, c_out, H, W), mean.reshape(B, latent, H, W),
            logvar.reshape(B, latent, H, W), loss)


if __name__ == "__main__":
    key = jax.random.PRNGKey(0)
    k_x, k_eps, k_p = jax.random.split(key, 3)

    B, C, H, W = 2, 3, 16, 16
    latent = 3
    x = jax.random.uniform(k_x, (B, C, H, W), jnp.float32)           # image-like input
    eps = jax.random.normal(k_eps, (B, latent, H, W), jnp.float32)   # reparam noise
    params = init_params(k_p, image_chann=C, encoded_c=32,
                         latent_chann=latent, output_chann=C)

    recon, mean, logvar, loss, log = vae_forward(x, eps, params, tile_n=8192)
    jax.block_until_ready((recon, mean, logvar, loss))

    assert recon.shape == (B, C, H, W)
    assert mean.shape == (B, latent, H, W)
    assert logvar.shape == (B, latent, H, W)

    # correctness check against the un-folded pure-JAX reference
    r_recon, r_mean, r_logvar, r_loss = _reference_forward(x, eps, params)
    assert jnp.allclose(recon, r_recon, rtol=1e-3, atol=1e-3)
    assert jnp.allclose(mean, r_mean, rtol=1e-3, atol=1e-3)
    assert jnp.allclose(logvar, r_logvar, rtol=1e-3, atol=1e-3)
    assert jnp.allclose(loss, r_loss, rtol=1e-3, atol=1e-3)

    print("KERNEL_OK")
</pallas_src>

<mosaic_0001>
module attributes {stable_mosaic.version = 11 : i64} {
  func.func @_vae_kernel(%arg0: i32, %arg1: i32, %arg2: memref<1x3x256xf32, #tpu.memory_space<vmem>>, %arg3: memref<1x3x256xf32, #tpu.memory_space<vmem>>, %arg4: memref<3x3xf32, #tpu.memory_space<vmem>>, %arg5: memref<3x1xf32, #tpu.memory_space<vmem>>, %arg6: memref<3x3xf32, #tpu.memory_space<vmem>>, %arg7: memref<3x1xf32, #tpu.memory_space<vmem>>, %arg8: memref<3x3xf32, #tpu.memory_space<vmem>>, %arg9: memref<3x1xf32, #tpu.memory_space<vmem>>, %arg10: memref<1x3x256xf32, #tpu.memory_space<vmem>>, %arg11: memref<1x3x256xf32, #tpu.memory_space<vmem>>, %arg12: memref<1x3x256xf32, #tpu.memory_space<vmem>>, %arg13: memref<1x1x8x128xf32, #tpu.memory_space<vmem>>, %arg14: memref<1x1x8x128xf32, #tpu.memory_space<vmem>>) attributes {dimension_semantics = [#tpu.dimension_semantics<parallel>, #tpu.dimension_semantics<parallel>], iteration_bounds = array<i64: 2, 1>, scalar_prefetch = 0 : i64, scratch_operands = 0 : i64, tpu.core_type = #tpu.core_type<tc>, window_params = [{transform_indices = @transform_0, window_bounds = array<i64: 1, 3, 256>}, {transform_indices = @transform_1, window_bounds = array<i64: 1, 3, 256>}, {pipeline_mode = #tpu.pipeline_mode<synchronous>, transform_indices = @transform_2, window_bounds = array<i64: 3, 3>}, {pipeline_mode = #tpu.pipeline_mode<synchronous>, transform_indices = @transform_3, window_bounds = array<i64: 3, 1>}, {pipeline_mode = #tpu.pipeline_mode<synchronous>, transform_indices = @transform_4, window_bounds = array<i64: 3, 3>}, {pipeline_mode = #tpu.pipeline_mode<synchronous>, transform_indices = @transform_5, window_bounds = array<i64: 3, 1>}, {pipeline_mode = #tpu.pipeline_mode<synchronous>, transform_indices = @transform_6, window_bounds = array<i64: 3, 3>}, {pipeline_mode = #tpu.pipeline_mode<synchronous>, transform_indices = @transform_7, window_bounds = array<i64: 3, 1>}, {transform_indices = @transform_8, window_bounds = array<i64: 1, 3, 256>}, {transform_indices = @transform_9, window_bounds = array<i64: 1, 3, 256>}, {transform_indices = @transform_10, window_bounds = array<i64: 1, 3, 256>}, {transform_indices = @transform_11, window_bounds = array<i64: 1, 1, 8, 128>}, {transform_indices = @transform_12, window_bounds = array<i64: 1, 1, 8, 128>}]} {
    %c0 = arith.constant 0 : index
    %c0_0 = arith.constant 0 : index
    %c0_1 = arith.constant 0 : index
    %0 = vector.load %arg2[%c0, %c0_0, %c0_1] : memref<1x3x256xf32, #tpu.memory_space<vmem>>, vector<1x3x256xf32>
    %1 = vector.shape_cast %0 : vector<1x3x256xf32> to vector<3x256xf32>
    %c0_2 = arith.constant 0 : index
    %c0_3 = arith.constant 0 : index
    %c0_4 = arith.constant 0 : index
    %2 = vector.load %arg3[%c0_2, %c0_3, %c0_4] : memref<1x3x256xf32, #tpu.memory_space<vmem>>, vector<1x3x256xf32>
    %3 = vector.shape_cast %2 : vector<1x3x256xf32> to vector<3x256xf32>
    %c0_5 = arith.constant 0 : index
    %c0_6 = arith.constant 0 : index
    %4 = vector.load %arg4[%c0_5, %c0_6] : memref<3x3xf32, #tpu.memory_space<vmem>>, vector<3x3xf32>
    %c0_7 = arith.constant 0 : index
    %c0_8 = arith.constant 0 : index
    %5 = vector.load %arg5[%c0_7, %c0_8] : memref<3x1xf32, #tpu.memory_space<vmem>>, vector<3x1xf32>
    %6 = vector.extract_strided_slice %4 {offsets = [0, 0], sizes = [3, 1], strides = [1, 1]} : vector<3x3xf32> to vector<3x1xf32>
    %7 = vector.extract_strided_slice %1 {offsets = [0, 0], sizes = [1, 256], strides = [1, 1]} : vector<3x256xf32> to vector<1x256xf32>
    %8 = vector.broadcast %6 : vector<3x1xf32> to vector<3x256xf32>
    %9 = vector.broadcast %7 : vector<1x256xf32> to vector<3x256xf32>
    %10 = arith.mulf %8, %9 : vector<3x256xf32>
    %11 = vector.extract_strided_slice %4 {offsets = [0, 1], sizes = [3, 1], strides = [1, 1]} : vector<3x3xf32> to vector<3x1xf32>
    %12 = vector.extract_strided_slice %1 {offsets = [1, 0], sizes = [1, 256], strides = [1, 1]} : vector<3x256xf32> to vector<1x256xf32>
    %13 = vector.broadcast %11 : vector<3x1xf32> to vector<3x256xf32>
    %14 = vector.broadcast %12 : vector<1x256xf32> to vector<3x256xf32>
    %15 = arith.mulf %13, %14 : vector<3x256xf32>
    %16 = arith.addf %10, %15 : vector<3x256xf32>
    %17 = vector.extract_strided_slice %4 {offsets = [0, 2], sizes = [3, 1], strides = [1, 1]} : vector<3x3xf32> to vector<3x1xf32>
    %18 = vector.extract_strided_slice %1 {offsets = [2, 0], sizes = [1, 256], strides = [1, 1]} : vector<3x256xf32> to vector<1x256xf32>
    %19 = vector.broadcast %17 : vector<3x1xf32> to vector<3x256xf32>
    %20 = vector.broadcast %18 : vector<1x256xf32> to vector<3x256xf32>
    %21 = arith.mulf %19, %20 : vector<3x256xf32>
    %22 = arith.addf %16, %21 : vector<3x256xf32>
    %23 = vector.broadcast %5 : vector<3x1xf32> to vector<3x256xf32>
    %24 = arith.addf %22, %23 : vector<3x256xf32>
    %c0_9 = arith.constant 0 : index
    %c0_10 = arith.constant 0 : index
    %25 = vector.load %arg6[%c0_9, %c0_10] : memref<3x3xf32, #tpu.memory_space<vmem>>, vector<3x3xf32>
    %c0_11 = arith.constant 0 : index
    %c0_12 = arith.constant 0 : index
    %26 = vector.load %arg7[%c0_11, %c0_12] : memref<3x1xf32, #tpu.memory_space<vmem>>, vector<3x1xf32>
    %27 = vector.extract_strided_slice %25 {offsets = [0, 0], sizes = [3, 1], strides = [1, 1]} : vector<3x3xf32> to vector<3x1xf32>
    %28 = vector.extract_strided_slice %1 {offsets = [0, 0], sizes = [1, 256], strides = [1, 1]} : vector<3x256xf32> to vector<1x256xf32>
    %29 = vector.broadcast %27 : vector<3x1xf32> to vector<3x256xf32>
    %30 = vector.broadcast %28 : vector<1x256xf32> to vector<3x256xf32>
    %31 = arith.mulf %29, %30 : vector<3x256xf32>
    %32 = vector.extract_strided_slice %25 {offsets = [0, 1], sizes = [3, 1], strides = [1, 1]} : vector<3x3xf32> to vector<3x1xf32>
    %33 = vector.extract_strided_slice %1 {offsets = [1, 0], sizes = [1, 256], strides = [1, 1]} : vector<3x256xf32> to vector<1x256xf32>
    %34 = vector.broadcast %32 : vector<3x1xf32> to vector<3x256xf32>
    %35 = vector.broadcast %33 : vector<1x256xf32> to vector<3x256xf32>
    %36 = arith.mulf %34, %35 : vector<3x256xf32>
    %37 = arith.addf %31, %36 : vector<3x256xf32>
    %38 = vector.extract_strided_slice %25 {offsets = [0, 2], sizes = [3, 1], strides = [1, 1]} : vector<3x3xf32> to vector<3x1xf32>
    %39 = vector.extract_strided_slice %1 {offsets = [2, 0], sizes = [1, 256], strides = [1, 1]} : vector<3x256xf32> to vector<1x256xf32>
    %40 = vector.broadcast %38 : vector<3x1xf32> to vector<3x256xf32>
    %41 = vector.broadcast %39 : vector<1x256xf32> to vector<3x256xf32>
    %42 = arith.mulf %40, %41 : vector<3x256xf32>
    %43 = arith.addf %37, %42 : vector<3x256xf32>
    %44 = vector.broadcast %26 : vector<3x1xf32> to vector<3x256xf32>
    %45 = arith.addf %43, %44 : vector<3x256xf32>
    %cst = arith.constant 5.000000e-01 : f32
    %46 = vector.broadcast %cst : f32 to vector<3x256xf32>
    %47 = arith.mulf %45, %46 : vector<3x256xf32>
    %48 = math.exp %47 : vector<3x256xf32>
    %49 = arith.mulf %48, %3 : vector<3x256xf32>
    %50 = arith.addf %24, %49 : vector<3x256xf32>
    %c0_13 = arith.constant 0 : index
    %c0_14 = arith.constant 0 : index
    %51 = vector.load %arg8[%c0_13, %c0_14] : memref<3x3xf32, #tpu.memory_space<vmem>>, vector<3x3xf32>
    %c0_15 = arith.constant 0 : index
    %c0_16 = arith.constant 0 : index
    %52 = vector.load %arg9[%c0_15, %c0_16] : memref<3x1xf32, #tpu.memory_space<vmem>>, vector<3x1xf32>
    %53 = vector.extract_strided_slice %51 {offsets = [0, 0], sizes = [3, 1], strides = [1, 1]} : vector<3x3xf32> to vector<3x1xf32>
    %54 = vector.extract_strided_slice %50 {offsets = [0, 0], sizes = [1, 256], strides = [1, 1]} : vector<3x256xf32> to vector<1x256xf32>
    %55 = vector.broadcast %53 : vector<3x1xf32> to vector<3x256xf32>
    %56 = vector.broadcast %54 : vector<1x256xf32> to vector<3x256xf32>
    %57 = arith.mulf %55, %56 : vector<3x256xf32>
    %58 = vector.extract_strided_slice %51 {offsets = [0, 1], sizes = [3, 1], strides = [1, 1]} : vector<3x3xf32> to vector<3x1xf32>
    %59 = vector.extract_strided_slice %50 {offsets = [1, 0], sizes = [1, 256], strides = [1, 1]} : vector<3x256xf32> to vector<1x256xf32>
    %60 = vector.broadcast %58 : vector<3x1xf32> to vector<3x256xf32>
    %61 = vector.broadcast %59 : vector<1x256xf32> to vector<3x256xf32>
    %62 = arith.mulf %60, %61 : vector<3x256xf32>
    %63 = arith.addf %57, %62 : vector<3x256xf32>
    %64 = vector.extract_strided_slice %51 {offsets = [0, 2], sizes = [3, 1], strides = [1, 1]} : vector<3x3xf32> to vector<3x1xf32>
    %65 = vector.extract_strided_slice %50 {offsets = [2, 0], sizes = [1, 256], strides = [1, 1]} : vector<3x256xf32> to vector<1x256xf32>
    %66 = vector.broadcast %64 : vector<3x1xf32> to vector<3x256xf32>
    %67 = vector.broadcast %65 : vector<1x256xf32> to vector<3x256xf32>
    %68 = arith.mulf %66, %67 : vector<3x256xf32>
    %69 = arith.addf %63, %68 : vector<3x256xf32>
    %70 = vector.broadcast %52 : vector<3x1xf32> to vector<3x256xf32>
    %71 = arith.addf %69, %70 : vector<3x256xf32>
    %72 = arith.negf %71 : vector<3x256xf32>
    %73 = math.exp %72 : vector<3x256xf32>
    %cst_17 = arith.constant 1.000000e+00 : f32
    %74 = vector.broadcast %cst_17 : f32 to vector<3x256xf32>
    %75 = arith.addf %74, %73 : vector<3x256xf32>
    %76 = arith.divf %74, %75 : vector<3x256xf32>
    %c0_18 = arith.constant 0 : index
    %c0_19 = arith.constant 0 : index
    %c0_20 = arith.constant 0 : index
    %77 = vector.load %arg10[%c0_18, %c0_19, %c0_20] : memref<1x3x256xf32, #tpu.memory_space<vmem>>, vector<1x3x256xf32>
    %78 = vector.shape_cast %77 : vector<1x3x256xf32> to vector<3x256xf32>
    %79 = vector.shape_cast %76 : vector<3x256xf32> to vector<1x3x256xf32>
    tpu.vector_store %arg10[%c0_18, %c0_19, %c0_20], %79 {strides = array<i32>} : memref<1x3x256xf32, #tpu.memory_space<vmem>>, vector<1x3x256xf32>,
    %c0_21 = arith.constant 0 : index
    %c0_22 = arith.constant 0 : index
    %c0_23 = arith.constant 0 : index
    %80 = vector.load %arg11[%c0_21, %c0_22, %c0_23] : memref<1x3x256xf32, #tpu.memory_space<vmem>>, vector<1x3x256xf32>
    %81 = vector.shape_cast %80 : vector<1x3x256xf32> to vector<3x256xf32>
    %82 = vector.shape_cast %24 : vector<3x256xf32> to vector<1x3x256xf32>
    tpu.vector_store %arg11[%c0_21, %c0_22, %c0_23], %82 {strides = array<i32>} : memref<1x3x256xf32, #tpu.memory_space<vmem>>, vector<1x3x256xf32>,
    %c0_24 = arith.constant 0 : index
    %c0_25 = arith.constant 0 : index
    %c0_26 = arith.constant 0 : index
    %83 = vector.load %arg12[%c0_24, %c0_25, %c0_26] : memref<1x3x256xf32, #tpu.memory_space<vmem>>, vector<1x3x256xf32>
    %84 = vector.shape_cast %83 : vector<1x3x256xf32> to vector<3x256xf32>
    %85 = vector.shape_cast %45 : vector<3x256xf32> to vector<1x3x256xf32>
    tpu.vector_store %arg12[%c0_24, %c0_25, %c0_26], %85 {strides = array<i32>} : memref<1x3x256xf32, #tpu.memory_space<vmem>>, vector<1x3x256xf32>,
    %86 = arith.subf %1, %76 : vector<3x256xf32>
    %87 = math.absf %86 : vector<3x256xf32>
    %88 = vector.shape_cast %87 : vector<3x256xf32> to vector<1x3x256xf32>
    %cst_27 = arith.constant dense<0.000000e+00> : vector<1xf32>
    %89 = vector.multi_reduction <add>, %88, %cst_27 [1, 2] : vector<1x3x256xf32> to vector<1xf32>
    %90 = vector.shape_cast %89 : vector<1xf32> to vector<1x1x1xf32>
    %91 = vector.extract %90[0, 0, 0] : f32 from vector<1x1x1xf32>
    %cst_28 = arith.constant 1.000000e+00 : f32
    %92 = vector.broadcast %cst_28 : f32 to vector<3x256xf32>
    %93 = arith.addf %92, %45 : vector<3x256xf32>
    %94 = arith.mulf %24, %24 : vector<3x256xf32>
    %95 = arith.subf %93, %94 : vector<3x256xf32>
    %96 = arith.mulf %48, %48 : vector<3x256xf32>
    %97 = arith.subf %95, %96 : vector<3x256xf32>
    %cst_29 = arith.constant -5.000000e-01 : f32
    %98 = vector.broadcast %cst_29 : f32 to vector<3x256xf32>
    %99 = arith.mulf %98, %97 : vector<3x256xf32>
    %100 = vector.shape_cast %99 : vector<3x256xf32> to vector<1x3x256xf32>
    %cst_30 = arith.constant dense<0.000000e+00> : vector<1xf32>
    %101 = vector.multi_reduction <add>, %100, %cst_30 [1, 2] : vector<1x3x256xf32> to vector<1xf32>
    %102 = vector.shape_cast %101 : vector<1xf32> to vector<1x1x1xf32>
    %103 = vector.extract %102[0, 0, 0] : f32 from vector<1x1x1xf32>
    %104 = vector.broadcast %91 : f32 to vector<1x1x8x128xf32>
    %c0_31 = arith.constant 0 : index
    %c0_32 = arith.constant 0 : index
    %c0_33 = arith.constant 0 : index
    %c0_34 = arith.constant 0 : index
    %105 = vector.load %arg13[%c0_31, %c0_32, %c0_33, %c0_34] : memref<1x1x8x128xf32, #tpu.memory_space<vmem>>, vector<1x1x8x128xf32>
    tpu.vector_store %arg13[%c0_31, %c0_32, %c0_33, %c0_34], %104 {strides = array<i32>} : memref<1x1x8x128xf32, #tpu.memory_space<vmem>>, vector<1x1x8x128xf32>,
    %106 = vector.broadcast %103 : f32 to vector<1x1x8x128xf32>
    %c0_35 = arith.constant 0 : index
    %c0_36 = arith.constant 0 : index
    %c0_37 = arith.constant 0 : index
    %c0_38 = arith.constant 0 : index
    %107 = vector.load %arg14[%c0_35, %c0_36, %c0_37, %c0_38] : memref<1x1x8x128xf32, #tpu.memory_space<vmem>>, vector<1x1x8x128xf32>
    tpu.vector_store %arg14[%c0_35, %c0_36, %c0_37, %c0_38], %106 {strides = array<i32>} : memref<1x1x8x128xf32, #tpu.memory_space<vmem>>, vector<1x1x8x128xf32>,
    return
  }
  func.func @transform_0(%arg0: i32, %arg1: i32) -> (i32, i32, i32) {
    %c0_i32 = arith.constant 0 : i32
    %c0_i32_0 = arith.constant 0 : i32
    return %arg0, %c0_i32, %arg1 : i32, i32, i32
  }
  func.func @transform_1(%arg0: i32, %arg1: i32) -> (i32, i32, i32) {
    %c0_i32 = arith.constant 0 : i32
    %c0_i32_0 = arith.constant 0 : i32
    return %arg0, %c0_i32, %arg1 : i32, i32, i32
  }
  func.func @transform_2(%arg0: i32, %arg1: i32) -> (i32, i32) {
    %c0_i32 = arith.constant 0 : i32
    %c0_i32_0 = arith.constant 0 : i32
    %c0_i32_1 = arith.constant 0 : i32
    return %c0_i32, %c0_i32_0 : i32, i32
  }
  func.func @transform_3(%arg0: i32, %arg1: i32) -> (i32, i32) {
    %c0_i32 = arith.constant 0 : i32
    %c0_i32_0 = arith.constant 0 : i32
    %c0_i32_1 = arith.constant 0 : i32
    return %c0_i32, %c0_i32_0 : i32, i32
  }
  func.func @transform_4(%arg0: i32, %arg1: i32) -> (i32, i32) {
    %c0_i32 = arith.constant 0 : i32
    %c0_i32_0 = arith.constant 0 : i32
    %c0_i32_1 = arith.constant 0 : i32
    return %c0_i32, %c0_i32_0 : i32, i32
  }
  func.func @transform_5(%arg0: i32, %arg1: i32) -> (i32, i32) {
    %c0_i32 = arith.constant 0 : i32
    %c0_i32_0 = arith.constant 0 : i32
    %c0_i32_1 = arith.constant 0 : i32
    return %c0_i32, %c0_i32_0 : i32, i32
  }
  func.func @transform_6(%arg0: i32, %arg1: i32) -> (i32, i32) {
    %c0_i32 = arith.constant 0 : i32
    %c0_i32_0 = arith.constant 0 : i32
    %c0_i32_1 = arith.constant 0 : i32
    return %c0_i32, %c0_i32_0 : i32, i32
  }
  func.func @transform_7(%arg0: i32, %arg1: i32) -> (i32, i32) {
    %c0_i32 = arith.constant 0 : i32
    %c0_i32_0 = arith.constant 0 : i32
    %c0_i32_1 = arith.constant 0 : i32
    return %c0_i32, %c0_i32_0 : i32, i32
  }
  func.func @transform_8(%arg0: i32, %arg1: i32) -> (i32, i32, i32) {
    %c0_i32 = arith.constant 0 : i32
    %c0_i32_0 = arith.constant 0 : i32
    return %arg0, %c0_i32, %arg1 : i32, i32, i32
  }
  func.func @transform_9(%arg0: i32, %arg1: i32) -> (i32, i32, i32) {
    %c0_i32 = arith.constant 0 : i32
    %c0_i32_0 = arith.constant 0 : i32
    return %arg0, %c0_i32, %arg1 : i32, i32, i32
  }
  func.func @transform_10(%arg0: i32, %arg1: i32) -> (i32, i32, i32) {
    %c0_i32 = arith.constant 0 : i32
    %c0_i32_0 = arith.constant 0 : i32
    return %arg0, %c0_i32, %arg1 : i32, i32, i32
  }
  func.func @transform_11(%arg0: i32, %arg1: i32) -> (i32, i32, i32, i32) {
    %c0_i32 = arith.constant 0 : i32
    %c0_i32_0 = arith.constant 0 : i32
    %c0_i32_1 = arith.constant 0 : i32
    return %arg0, %arg1, %c0_i32, %c0_i32_0 : i32, i32, i32, i32
  }
  func.func @transform_12(%arg0: i32, %arg1: i32) -> (i32, i32, i32, i32) {
    %c0_i32 = arith.constant 0 : i32
    %c0_i32_0 = arith.constant 0 : i32
    %c0_i32_1 = arith.constant 0 : i32
    return %arg0, %arg1, %c0_i32, %c0_i32_0 : i32, i32, i32, i32
  }
}

</mosaic_0001>

<llo_original>
// kernel: vae_forward.1
$region0: #{vae_forward.1}
  #allocation0 [shape = 'u32[]', space=smem, size = 0x4, offset = 0x4, fixed_abs, tag = 'smem constant byte address 0x4 - core index']
  #allocation1 [shape = 'u32[72,128]{1,0:T(1,128)}', space=vmem, size = 0x9000, scoped, tag = 'internal scratch']
  %s0 = inlined_call_operand.vmem [shape: f32[2,3,256], index: 0, kind: input, shape index: {}]
  %s1 = inlined_call_operand.vmem [shape: f32[2,3,256], index: 1, kind: input, shape index: {}]
  %s2 = inlined_call_operand.vmem [shape: f32[3,3], index: 2, kind: input, shape index: {}]
  %s3 = inlined_call_operand.vmem [shape: f32[3,1], index: 3, kind: input, shape index: {}]
  %s4 = inlined_call_operand.vmem [shape: f32[3,3], index: 4, kind: input, shape index: {}]
  %s5 = inlined_call_operand.vmem [shape: f32[3,1], index: 5, kind: input, shape index: {}]
  %s6 = inlined_call_operand.vmem [shape: f32[3,3], index: 6, kind: input, shape index: {}]
  %s7 = inlined_call_operand.vmem [shape: f32[3,1], index: 7, kind: input, shape index: {}]
  %s8 = inlined_call_operand.vmem [shape: f32[2,3,256], index: 8, kind: output, shape index: {0}]
  %s9 = inlined_call_operand.vmem [shape: f32[2,3,256], index: 9, kind: output, shape index: {1}]
  %s10 = inlined_call_operand.vmem [shape: f32[2,3,256], index: 10, kind: output, shape index: {2}]
  %s11 = inlined_call_operand.vmem [shape: f32[2,1,8,128], index: 11, kind: output, shape index: {3}]
  %s12 = inlined_call_operand.vmem [shape: f32[2,1,8,128], index: 12, kind: output, shape index: {4}]
  %13 = xla_tuple %s8, %s9, %s10, %s11, %s12
  %s14 = sld [smem:[#allocation0]]
  $region97: #{vae_forward.1} parent=0
    _
  %s16 = ssub.s32 1, %s14
  %s17 = scalar_select 0, %s16, %s14
  loop: start=0, step=1, limit=4
  $region2: #{vae_forward.1} parent=0 // loop_pre_header
    _
  $region3: #{vae_forward.1} parent=0 // loop_header
    %s19 = sphi 0, %s23
    %p20 = scmp.ge.s32.totalorder %s19, 4
    %s26 = sphi 0, %s38
    %s27 = sphi 0, %s34
    %s28 = sphi 0, %s26
    %s29 = sphi 0, %s27
    %s30 = sphi 0, %s28
    %s31 = sphi 0, %s29
    %s43 = sphi 0, %s45
    %s46 = sphi 0, %s43
    %s47 = sphi 0, %s46
    %s63 = sphi 0, %s47
    %s71 = sphi 0, %s73
    %s74 = sphi 0, %s71
    %s75 = sphi 0, %s74
    %s91 = sphi 0, %s75
    %s95 = sphi 0, %s95
    %s97 = sphi 0, %s95
    %s98 = sphi 0, %s97
    %s112 = sphi 0, %s98
    %s116 = sphi 0, %s116
    %s118 = sphi 0, %s116
    %s119 = sphi 0, %s118
    %s133 = sphi 0, %s119
    %s137 = sphi 0, %s137
    %s139 = sphi 0, %s137
    %s140 = sphi 0, %s139
    %s154 = sphi 0, %s140
    %s158 = sphi 0, %s158
    %s160 = sphi 0, %s158
    %s161 = sphi 0, %s160
    %s175 = sphi 0, %s161
    %s179 = sphi 0, %s179
    %s181 = sphi 0, %s179
    %s182 = sphi 0, %s181
    %s196 = sphi 0, %s182
    %s200 = sphi 0, %s200
    %s202 = sphi 0, %s200
    %s203 = sphi 0, %s202
    %s217 = sphi 0, %s203
    %s225 = sphi 0, %s227
    %s228 = sphi 0, %s225
    %s229 = sphi 0, %s228
    %s245 = sphi 0, %s229
    %s253 = sphi 0, %s255
    %s256 = sphi 0, %s253
    %s257 = sphi 0, %s256
    %s273 = sphi 0, %s257
    %s281 = sphi 0, %s283
    %s284 = sphi 0, %s281
    %s285 = sphi 0, %s284
    %s301 = sphi 0, %s285
    %s309 = sphi 0, %s311
    %s312 = sphi 0, %s309
    %s313 = sphi 0, %s312
    %s329 = sphi 0, %s313
    %s337 = sphi 0, %s339
    %s340 = sphi 0, %s337
    %s341 = sphi 0, %s340
    %s357 = sphi 0, %s341
  $region4: #{vae_forward.1} parent=0 // loop_header_branch
    %22 = sbr.rel (%p20) target = $region8
  $region5: #{vae_forward.1} parent=0 // loop_body
    %s24 = ssub.s32 %s19, 1
    %s25 = ssub.s32 %s19, 2
    %s32 = sadd.s32 1, %s27
    %p33 = scmp.ge.s32.totalorder %s32, 1
    %s34 = scalar_select %p33, 0, %s32
    %s35 = sadd.s32 1, %s26
    %s36 = scalar_select %p33, %s35, %s26
    %p37 = scmp.ge.s32.totalorder %s36, 2
    %s38 = scalar_select %p37, 0, %s36
    %s39 = ssub.s32 %s26, %s38
    %s40 = ssub.s32 %s27, %s34
    %s41 = sor.u32 %s39, %s40
    %p42 = scmp.eq.s32.totalorder %s41, 0
    %s44 = sadd.s32 %s43, 1
    %s45 = scalar_select %p42, %s43, %s44
    %p48 = pneg %p42
    %p49 = scmp.eq.s32.totalorder %s19, 1
    %p50 = por %p48, %p49
    %p51 = scmp.ne.s32.totalorder %s43, %s46
    %p52 = scmp.eq.s32.totalorder %s19, 0
    %p53 = por %p51, %p52
    %p54 = scmp.ne.s32.totalorder %s43, %s46
    %p55 = scmp.eq.s32.totalorder %s24, 1
    %p56 = por %p54, %p55
    %p57 = scmp.ne.s32.totalorder %s46, %s47
    %p58 = scmp.eq.s32.totalorder %s24, 0
    %p59 = por %p57, %p58
    %p60 = scmp.ne.s32.totalorder %s46, %s47
    %p61 = scmp.eq.s32.totalorder %s25, 1
    %p62 = por %p60, %p61
    %p64 = scmp.ne.s32.totalorder %s47, %s63
    %p65 = scmp.eq.s32.totalorder %s25, 0
    %p66 = por %p64, %p65
    %s67 = ssub.s32 %s26, %s38
    %s68 = ssub.s32 %s27, %s34
    %s69 = sor.u32 %s67, %s68
    %p70 = scmp.eq.s32.totalorder %s69, 0
    %s72 = sadd.s32 %s71, 1
    %s73 = scalar_select %p70, %s71, %s72
    %p76 = pneg %p70
    %p77 = scmp.eq.s32.totalorder %s19, 1
    %p78 = por %p76, %p77
    %p79 = scmp.ne.s32.totalorder %s71, %s74
    %p80 = scmp.eq.s32.totalorder %s19, 0
    %p81 = por %p79, %p80
    %p82 = scmp.ne.s32.totalorder %s71, %s74
    %p83 = scmp.eq.s32.totalorder %s24, 1
    %p84 = por %p82, %p83
    %p85 = scmp.ne.s32.totalorder %s74, %s75
    %p86 = scmp.eq.s32.totalorder %s24, 0
    %p87 = por %p85, %p86
    %p88 = scmp.ne.s32.totalorder %s74, %s75
    %p89 = scmp.eq.s32.totalorder %s25, 1
    %p90 = por %p88, %p89
    %p92 = scmp.ne.s32.totalorder %s75, %s91
    %p93 = scmp.eq.s32.totalorder %s25, 0
    %p94 = por %p92, %p93
    %s96 = sadd.s32 %s95, 1
    %p99 = scmp.eq.s32.totalorder %s19, 1
    %p100 = scmp.ne.s32.totalorder %s95, %s97
    %p101 = scmp.eq.s32.totalorder %s19, 0
    %p102 = por %p100, %p101
    %p103 = scmp.ne.s32.totalorder %s95, %s97
    %p104 = scmp.eq.s32.totalorder %s24, 1
    %p105 = por %p103, %p104
    %p106 = scmp.ne.s32.totalorder %s97, %s98
    %p107 = scmp.eq.s32.totalorder %s24, 0
    %p108 = por %p106, %p107
    %p109 = scmp.ne.s32.totalorder %s97, %s98
    %p110 = scmp.eq.s32.totalorder %s25, 1
    %p111 = por %p109, %p110
    %p113 = scmp.ne.s32.totalorder %s98, %s112
    %p114 = scmp.eq.s32.totalorder %s25, 0
    %p115 = por %p113, %p114
    %s117 = sadd.s32 %s116, 1
    %p120 = scmp.eq.s32.totalorder %s19, 1
    %p121 = scmp.ne.s32.totalorder %s116, %s118
    %p122 = scmp.eq.s32.totalorder %s19, 0
    %p123 = por %p121, %p122
    %p124 = scmp.ne.s32.totalorder %s116, %s118
    %p125 = scmp.eq.s32.totalorder %s24, 1
    %p126 = por %p124, %p125
    %p127 = scmp.ne.s32.totalorder %s118, %s119
    %p128 = scmp.eq.s32.totalorder %s24, 0
    %p129 = por %p127, %p128
    %p130 = scmp.ne.s32.totalorder %s118, %s119
    %p131 = scmp.eq.s32.totalorder %s25, 1
    %p132 = por %p130, %p131
    %p134 = scmp.ne.s32.totalorder %s119, %s133
    %p135 = scmp.eq.s32.totalorder %s25, 0
    %p136 = por %p134, %p135
    %s138 = sadd.s32 %s137, 1
    %p141 = scmp.eq.s32.totalorder %s19, 1
    %p142 = scmp.ne.s32.totalorder %s137, %s139
    %p143 = scmp.eq.s32.totalorder %s19, 0
    %p144 = por %p142, %p143
    %p145 = scmp.ne.s32.totalorder %s137, %s139
    %p146 = scmp.eq.s32.totalorder %s24, 1
    %p147 = por %p145, %p146
    %p148 = scmp.ne.s32.totalorder %s139, %s140
    %p149 = scmp.eq.s32.totalorder %s24, 0
    %p150 = por %p148, %p149
    %p151 = scmp.ne.s32.totalorder %s139, %s140
    %p152 = scmp.eq.s32.totalorder %s25, 1
    %p153 = por %p151, %p152
    %p155 = scmp.ne.s32.totalorder %s140, %s154
    %p156 = scmp.eq.s32.totalorder %s25, 0
    %p157 = por %p155, %p156
    %s159 = sadd.s32 %s158, 1
    %p162 = scmp.eq.s32.totalorder %s19, 1
    %p163 = scmp.ne.s32.totalorder %s158, %s160
    %p164 = scmp.eq.s32.totalorder %s19, 0
    %p165 = por %p163, %p164
    %p166 = scmp.ne.s32.totalorder %s158, %s160
    %p167 = scmp.eq.s32.totalorder %s24, 1
    %p168 = por %p166, %p167
    %p169 = scmp.ne.s32.totalorder %s160, %s161
    %p170 = scmp.eq.s32.totalorder %s24, 0
    %p171 = por %p169, %p170
    %p172 = scmp.ne.s32.totalorder %s160, %s161
    %p173 = scmp.eq.s32.totalorder %s25, 1
    %p174 = por %p172, %p173
    %p176 = scmp.ne.s32.totalorder %s161, %s175
    %p177 = scmp.eq.s32.totalorder %s25, 0
    %p178 = por %p176, %p177
    %s180 = sadd.s32 %s179, 1
    %p183 = scmp.eq.s32.totalorder %s19, 1
    %p184 = scmp.ne.s32.totalorder %s179, %s181
    %p185 = scmp.eq.s32.totalorder %s19, 0
    %p186 = por %p184, %p185
    %p187 = scmp.ne.s32.totalorder %s179, %s181
    %p188 = scmp.eq.s32.totalorder %s24, 1
    %p189 = por %p187, %p188
    %p190 = scmp.ne.s32.totalorder %s181, %s182
    %p191 = scmp.eq.s32.totalorder %s24, 0
    %p192 = por %p190, %p191
    %p193 = scmp.ne.s32.totalorder %s181, %s182
    %p194 = scmp.eq.s32.totalorder %s25, 1
    %p195 = por %p193, %p194
    %p197 = scmp.ne.s32.totalorder %s182, %s196
    %p198 = scmp.eq.s32.totalorder %s25, 0
    %p199 = por %p197, %p198
    %s201 = sadd.s32 %s200, 1
    %p204 = scmp.eq.s32.totalorder %s19, 1
    %p205 = scmp.ne.s32.totalorder %s200, %s202
    %p206 = scmp.eq.s32.totalorder %s19, 0
    %p207 = por %p205, %p206
    %p208 = scmp.ne.s32.totalorder %s200, %s202
    %p209 = scmp.eq.s32.totalorder %s24, 1
    %p210 = por %p208, %p209
    %p211 = scmp.ne.s32.totalorder %s202, %s203
    %p212 = scmp.eq.s32.totalorder %s24, 0
    %p213 = por %p211, %p212
    %p214 = scmp.ne.s32.totalorder %s202, %s203
    %p215 = scmp.eq.s32.totalorder %s25, 1
    %p216 = por %p214, %p215
    %p218 = scmp.ne.s32.totalorder %s203, %s217
    %p219 = scmp.eq.s32.totalorder %s25, 0
    %p220 = por %p218, %p219
    %s221 = ssub.s32 %s26, %s38
    %s222 = ssub.s32 %s27, %s34
    %s223 = sor.u32 %s221, %s222
    %p224 = scmp.eq.s32.totalorder %s223, 0
    %s226 = sadd.s32 %s225, 1
    %s227 = scalar_select %p224, %s225, %s226
    %p230 = pneg %p224
    %p231 = scmp.eq.s32.totalorder %s19, 1
    %p232 = por %p230, %p231
    %p233 = scmp.ne.s32.totalorder %s225, %s228
    %p234 = scmp.eq.s32.totalorder %s19, 0
    %p235 = por %p233, %p234
    %p236 = scmp.ne.s32.totalorder %s225, %s228
    %p237 = scmp.eq.s32.totalorder %s24, 1
    %p238 = por %p236, %p237
    %p239 = scmp.ne.s32.totalorder %s228, %s229
    %p240 = scmp.eq.s32.totalorder %s24, 0
    %p241 = por %p239, %p240
    %p242 = scmp.ne.s32.totalorder %s228, %s229
    %p243 = scmp.eq.s32.totalorder %s25, 1
    %p244 = por %p242, %p243
    %p246 = scmp.ne.s32.totalorder %s229, %s245
    %p247 = scmp.eq.s32.totalorder %s25, 0
    %p248 = por %p246, %p247
    %s249 = ssub.s32 %s26, %s38
    %s250 = ssub.s32 %s27, %s34
    %s251 = sor.u32 %s249, %s250
    %p252 = scmp.eq.s32.totalorder %s251, 0
    %s254 = sadd.s32 %s253, 1
    %s255 = scalar_select %p252, %s253, %s254
    %p258 = pneg %p252
    %p259 = scmp.eq.s32.totalorder %s19, 1
    %p260 = por %p258, %p259
    %p261 = scmp.ne.s32.totalorder %s253, %s256
    %p262 = scmp.eq.s32.totalorder %s19, 0
    %p263 = por %p261, %p262
    %p264 = scmp.ne.s32.totalorder %s253, %s256
    %p265 = scmp.eq.s32.totalorder %s24, 1
    %p266 = por %p264, %p265
    %p267 = scmp.ne.s32.totalorder %s256, %s257
    %p268 = scmp.eq.s32.totalorder %s24, 0
    %p269 = por %p267, %p268
    %p270 = scmp.ne.s32.totalorder %s256, %s257
    %p271 = scmp.eq.s32.totalorder %s25, 1
    %p272 = por %p270, %p271
    %p274 = scmp.ne.s32.totalorder %s257, %s273
    %p275 = scmp.eq.s32.totalorder %s25, 0
    %p276 = por %p274, %p275
    %s277 = ssub.s32 %s26, %s38
    %s278 = ssub.s32 %s27, %s34
    %s279 = sor.u32 %s277, %s278
    %p280 = scmp.eq.s32.totalorder %s279, 0
    %s282 = sadd.s32 %s281, 1
    %s283 = scalar_select %p280, %s281, %s282
    %p286 = pneg %p280
    %p287 = scmp.eq.s32.totalorder %s19, 1
    %p288 = por %p286, %p287
    %p289 = scmp.ne.s32.totalorder %s281, %s284
    %p290 = scmp.eq.s32.totalorder %s19, 0
    %p291 = por %p289, %p290
    %p292 = scmp.ne.s32.totalorder %s281, %s284
    %p293 = scmp.eq.s32.totalorder %s24, 1
    %p294 = por %p292, %p293
    %p295 = scmp.ne.s32.totalorder %s284, %s285
    %p296 = scmp.eq.s32.totalorder %s24, 0
    %p297 = por %p295, %p296
    %p298 = scmp.ne.s32.totalorder %s284, %s285
    %p299 = scmp.eq.s32.totalorder %s25, 1
    %p300 = por %p298, %p299
    %p302 = scmp.ne.s32.totalorder %s285, %s301
    %p303 = scmp.eq.s32.totalorder %s25, 0
    %p304 = por %p302, %p303
    %s305 = ssub.s32 %s26, %s38
    %s306 = ssub.s32 %s27, %s34
    %s307 = sor.u32 %s305, %s306
    %p308 = scmp.eq.s32.totalorder %s307, 0
    %s310 = sadd.s32 %s309, 1
    %s311 = scalar_select %p308, %s309, %s310
    %p314 = pneg %p308
    %p315 = scmp.eq.s32.totalorder %s19, 1
    %p316 = por %p314, %p315
    %p317 = scmp.ne.s32.totalorder %s309, %s312
    %p318 = scmp.eq.s32.totalorder %s19, 0
    %p319 = por %p317, %p318
    %p320 = scmp.ne.s32.totalorder %s309, %s312
    %p321 = scmp.eq.s32.totalorder %s24, 1
    %p322 = por %p320, %p321
    %p323 = scmp.ne.s32.totalorder %s312, %s313
    %p324 = scmp.eq.s32.totalorder %s24, 0
    %p325 = por %p323, %p324
    %p326 = scmp.ne.s32.totalorder %s312, %s313
    %p327 = scmp.eq.s32.totalorder %s25, 1
    %p328 = por %p326, %p327
    %p330 = scmp.ne.s32.totalorder %s313, %s329
    %p331 = scmp.eq.s32.totalorder %s25, 0
    %p332 = por %p330, %p331
    %s333 = ssub.s32 %s26, %s38
    %s334 = ssub.s32 %s27, %s34
    %s335 = sor.u32 %s333, %s334
    %p336 = scmp.eq.s32.totalorder %s335, 0
    %s338 = sadd.s32 %s337, 1
    %s339 = scalar_select %p336, %s337, %s338
    %p342 = pneg %p336
    %p343 = scmp.eq.s32.totalorder %s19, 1
    %p344 = por %p342, %p343
    %p345 = scmp.ne.s32.totalorder %s337, %s340
    %p346 = scmp.eq.s32.totalorder %s19, 0
    %p347 = por %p345, %p346
    %p348 = scmp.ne.s32.totalorder %s337, %s340
    %p349 = scmp.eq.s32.totalorder %s24, 1
    %p350 = por %p348, %p349
    %p351 = scmp.ne.s32.totalorder %s340, %s341
    %p352 = scmp.eq.s32.totalorder %s24, 0
    %p353 = por %p351, %p352
    %p354 = scmp.ne.s32.totalorder %s340, %s341
    %p355 = scmp.eq.s32.totalorder %s25, 1
    %p356 = por %p354, %p355
    %p358 = scmp.ne.s32.totalorder %s341, %s357
    %p359 = scmp.eq.s32.totalorder %s25, 0
    %p360 = por %p358, %p359
    %p361 = scmp.le.s32.totalorder 1, %s19
    %p362 = scmp.lt.s32.totalorder %s19, 3
    %p363 = pnand %p361, %p362
    %p364 = pneg %p363
    // Predicated region
    $region9: #{vae_forward.1} parent=5 // pred_check
      _
    $region10: #{vae_forward.1} parent=5 // pred_check_branch
      %366 = sbr.rel (%p363) target = $region12
    $region11: #{vae_forward.1} parent=5 // pred_region
      %s367 = ssub.s32 %s19, 1
      // Predicated region
      $region13: #{vae_forward.1} parent=11 // pred_check
        %p368 = pneg %p108
      $region14: #{vae_forward.1} parent=11 // pred_check_branch
        %370 = sbr.rel (%p368) target = $region16
      $region15: #{vae_forward.1} parent=11 // pred_region
        _
      $region16: #{vae_forward.1} parent=11 // pred_fallthru
        _
      // Predicated region
      $region17: #{vae_forward.1} parent=11 // pred_check
        %p371 = pneg %p129
      $region18: #{vae_forward.1} parent=11 // pred_check_branch
        %373 = sbr.rel (%p371) target = $region20
      $region19: #{vae_forward.1} parent=11 // pred_region
        _
      $region20: #{vae_forward.1} parent=11 // pred_fallthru
        _
      // Predicated region
      $region21: #{vae_forward.1} parent=11 // pred_check
        %p374 = pneg %p150
      $region22: #{vae_forward.1} parent=11 // pred_check_branch
        %376 = sbr.rel (%p374) target = $region24
      $region23: #{vae_forward.1} parent=11 // pred_region
        _
      $region24: #{vae_forward.1} parent=11 // pred_fallthru
        _
      // Predicated region
      $region25: #{vae_forward.1} parent=11 // pred_check
        %p377 = pneg %p171
      $region26: #{vae_forward.1} parent=11 // pred_check_branch
        %379 = sbr.rel (%p377) target = $region28
      $region27: #{vae_forward.1} parent=11 // pred_region
        _
      $region28: #{vae_forward.1} parent=11 // pred_fallthru
        _
      // Predicated region
      $region29: #{vae_forward.1} parent=11 // pred_check
        %p380 = pneg %p192
      $region30: #{vae_forward.1} parent=11 // pred_check_branch
        %382 = sbr.rel (%p380) target = $region32
      $region31: #{vae_forward.1} parent=11 // pred_region
        _
      $region32: #{vae_forward.1} parent=11 // pred_fallthru
        _
      // Predicated region
      $region33: #{vae_forward.1} parent=11 // pred_check
        %p383 = pneg %p213
      $region34: #{vae_forward.1} parent=11 // pred_check_branch
        %385 = sbr.rel (%p383) target = $region36
      $region35: #{vae_forward.1} parent=11 // pred_region
        _
      $region36: #{vae_forward.1} parent=11 // pred_fallthru
        _
    $region12: #{vae_forward.1} parent=5 // pred_fallthru
      _
    %p386 = scmp.lt.s32.totalorder %s19, 2
    // Predicated region
    $region37: #{vae_forward.1} parent=5 // pred_check
      %p387 = pneg %p386
    $region38: #{vae_forward.1} parent=5 // pred_check_branch
      %389 = sbr.rel (%p387) target = $region40
    $region39: #{vae_forward.1} parent=5 // pred_region
      // Predicated region
      $region41: #{vae_forward.1} parent=39 // pred_check
        %p390 = pneg %p53
      $region42: #{vae_forward.1} parent=39 // pred_check_branch
        %392 = sbr.rel (%p390) target = $region44
      $region43: #{vae_forward.1} parent=39 // pred_region
        %s393 = smul.u32 2, %s27
        %p394 = scmp.lt.s32.totalorder %s26, 1
        %s395 = scalar_select %p394, %s26, 1
        %p396 = scmp.lt.s32.totalorder %s393, 1
        %s397 = scalar_select %p396, %s393, 1
        %s398 = smul.addr %s395, 2
        %s399 = sadd.s32 %s397, %s398
        %s400 = smul.addr %s399, 4
        %s401 = scalar_lea.vmem %s0, %s400
        %s402 = smul.u32 2, %s27
      $region44: #{vae_forward.1} parent=39 // pred_fallthru
        _
      // Predicated region
      $region45: #{vae_forward.1} parent=39 // pred_check
        %p403 = pneg %p81
      $region46: #{vae_forward.1} parent=39 // pred_check_branch
        %405 = sbr.rel (%p403) target = $region48
      $region47: #{vae_forward.1} parent=39 // pred_region
        %s406 = smul.u32 2, %s27
        %p407 = scmp.lt.s32.totalorder %s26, 1
        %s408 = scalar_select %p407, %s26, 1
        %p409 = scmp.lt.s32.totalorder %s406, 1
        %s410 = scalar_select %p409, %s406, 1
        %s411 = smul.addr %s408, 2
        %s412 = sadd.s32 %s410, %s411
        %s413 = smul.addr %s412, 4
        %s414 = scalar_lea.vmem %s1, %s413
        %s415 = smul.u32 2, %s27
      $region48: #{vae_forward.1} parent=39 // pred_fallthru
        _
    $region40: #{vae_forward.1} parent=5 // pred_fallthru
      _
    %p416 = scmp.le.s32.totalorder 1, %s19
    %p417 = scmp.lt.s32.totalorder %s19, 3
    %p418 = pnand %p416, %p417
    %p419 = pneg %p418
    // Predicated region
    $region49: #{vae_forward.1} parent=5 // pred_check
      _
    $region50: #{vae_forward.1} parent=5 // pred_check_branch
      %421 = sbr.rel (%p418) target = $region52
    $region51: #{vae_forward.1} parent=5 // pred_region
      %s422 = ssub.s32 %s19, 1
      %s423 = smul.u32 2, %s29
      %p424 = scmp.lt.s32.totalorder %s28, 1
      %s425 = scalar_select %p424, %s28, 1
      %p426 = scmp.lt.s32.totalorder %s423, 1
      %s427 = scalar_select %p426, %s423, 1
      %s428 = smul.addr %s425, 2
      %s429 = sadd.s32 %s427, %s428
      %s430 = smul.addr %s429, 4
      %s431 = scalar_lea.vmem %s0, %s430
      %p432 = pneg %p59
      %p433 = pneg %p56
      %s434 = smul.u32 2, %s29
      %p435 = scmp.lt.s32.totalorder %s28, 1
      %s436 = scalar_select %p435, %s28, 1
      %p437 = scmp.lt.s32.totalorder %s434, 1
      %s438 = scalar_select %p437, %s434, 1
      %s439 = smul.addr %s436, 2
      %s440 = sadd.s32 %s438, %s439
      %s441 = smul.addr %s440, 4
      %s442 = scalar_lea.vmem %s1, %s441
      %p443 = pneg %p87
      %p444 = pneg %p84
      %p445 = pneg %p108
      %p446 = pneg %p105
      %p447 = pneg %p129
      %p448 = pneg %p126
      %p449 = pneg %p150
      %p450 = pneg %p147
      %p451 = pneg %p171
      %p452 = pneg %p168
      %p453 = pneg %p192
      %p454 = pneg %p189
      %p455 = pneg %p213
      %p456 = pneg %p210
      %p457 = pneg %p241
      %p458 = pneg %p238
      %s459 = smul.u32 2, %s29
      %p460 = scmp.lt.s32.totalorder %s28, 1
      %s461 = scalar_select %p460, %s28, 1
      %p462 = scmp.lt.s32.totalorder %s459, 1
      %s463 = scalar_select %p462, %s459, 1
      %s464 = smul.addr %s461, 2
      %s465 = sadd.s32 %s463, %s464
      %s466 = smul.addr %s465, 4
      %s467 = scalar_lea.vmem %s8, %s466
      %p468 = pneg %p269
      %p469 = pneg %p266
      %s470 = smul.u32 2, %s29
      %p471 = scmp.lt.s32.totalorder %s28, 1
      %s472 = scalar_select %p471, %s28, 1
      %p473 = scmp.lt.s32.totalorder %s470, 1
      %s474 = scalar_select %p473, %s470, 1
      %s475 = smul.addr %s472, 2
      %s476 = sadd.s32 %s474, %s475
      %s477 = smul.addr %s476, 4
      %s478 = scalar_lea.vmem %s9, %s477
      %p479 = pneg %p297
      %p480 = pneg %p294
      %s481 = smul.u32 2, %s29
      %p482 = scmp.lt.s32.totalorder %s28, 1
      %s483 = scalar_select %p482, %s28, 1
      %p484 = scmp.lt.s32.totalorder %s481, 1
      %s485 = scalar_select %p484, %s481, 1
      %s486 = smul.addr %s483, 2
      %s487 = sadd.s32 %s485, %s486
      %s488 = smul.addr %s487, 4
      %s489 = scalar_lea.vmem %s10, %s488
      %p490 = pneg %p325
      %p491 = pneg %p322
      %p492 = scmp.lt.s32.totalorder %s28, 1
      %s493 = scalar_select %p492, %s28, 1
      %p494 = scmp.lt.s32.totalorder %s29, 0
      %s495 = scalar_select %p494, %s29, 0
      %s496 = sadd.s32 %s495, %s493
      %s497 = smul.addr %s496, 8
      %s498 = scalar_lea.vmem %s11, %s497
      %p499 = pneg %p353
      %p500 = pneg %p350
      %p501 = scmp.lt.s32.totalorder %s28, 1
      %s502 = scalar_select %p501, %s28, 1
      %p503 = scmp.lt.s32.totalorder %s29, 0
      %s504 = scalar_select %p503, %s29, 0
      %s505 = sadd.s32 %s504, %s502
      %s506 = smul.addr %s505, 8
      %s507 = scalar_lea.vmem %s12, %s506
      %s508 = smul.u32 2, %s29
      %p509 = scmp.lt.s32.totalorder %s28, 1
      %s510 = scalar_select %p509, %s28, 1
      %p511 = scmp.lt.s32.totalorder %s508, 1
      %s512 = scalar_select %p511, %s508, 1
      %s513 = smul.addr %s510, 2
      %s514 = sadd.s32 %s512, %s513
      %s515 = smul.addr %s514, 4
      %s516 = scalar_lea.vmem %s0, %s515
      %s517 = smul.u32 2, %s29
      %s518 = smul.u32 2, %s29
      %p519 = scmp.lt.s32.totalorder %s28, 1
      %s520 = scalar_select %p519, %s28, 1
      %p521 = scmp.lt.s32.totalorder %s518, 1
      %s522 = scalar_select %p521, %s518, 1
      %s523 = smul.addr %s520, 2
      %s524 = sadd.s32 %s522, %s523
      %s525 = smul.addr %s524, 4
      %s526 = scalar_lea.vmem %s1, %s525
      %s527 = smul.u32 2, %s29
      %s528 = smul.u32 2, %s29
      %p529 = scmp.lt.s32.totalorder %s28, 1
      %s530 = scalar_select %p529, %s28, 1
      %p531 = scmp.lt.s32.totalorder %s528, 1
      %s532 = scalar_select %p531, %s528, 1
      %s533 = smul.addr %s530, 2
      %s534 = sadd.s32 %s532, %s533
      %s535 = smul.addr %s534, 4
      %s536 = scalar_lea.vmem %s8, %s535
      %s537 = smul.u32 2, %s29
      %s538 = smul.u32 2, %s29
      %p539 = scmp.lt.s32.totalorder %s28, 1
      %s540 = scalar_select %p539, %s28, 1
      %p541 = scmp.lt.s32.totalorder %s538, 1
      %s542 = scalar_select %p541, %s538, 1
      %s543 = smul.addr %s540, 2
      %s544 = sadd.s32 %s542, %s543
      %s545 = smul.addr %s544, 4
      %s546 = scalar_lea.vmem %s9, %s545
      %s547 = smul.u32 2, %s29
      %s548 = smul.u32 2, %s29
      %p549 = scmp.lt.s32.totalorder %s28, 1
      %s550 = scalar_select %p549, %s28, 1
      %p551 = scmp.lt.s32.totalorder %s548, 1
      %s552 = scalar_select %p551, %s548, 1
      %s553 = smul.addr %s550, 2
      %s554 = sadd.s32 %s552, %s553
      %s555 = smul.addr %s554, 4
      %s556 = scalar_lea.vmem %s10, %s555
      %s557 = smul.u32 2, %s29
      %p558 = scmp.lt.s32.totalorder %s28, 1
      %s559 = scalar_select %p558, %s28, 1
      %p560 = scmp.lt.s32.totalorder %s29, 0
      %s561 = scalar_select %p560, %s29, 0
      %s562 = sadd.s32 %s561, %s559
      %s563 = smul.addr %s562, 8
      %s564 = scalar_lea.vmem %s11, %s563
      %p565 = scmp.lt.s32.totalorder %s28, 1
      %s566 = scalar_select %p565, %s28, 1
      %p567 = scmp.lt.s32.totalorder %s29, 0
      %s568 = scalar_select %p567, %s29, 0
      %s569 = sadd.s32 %s568, %s566
      %s570 = smul.addr %s569, 8
      %s571 = scalar_lea.vmem %s12, %s570
      %v572 = vld [vmem:[%s516] sm:$0x77]
      %v573 = vld [vmem:[%s526] sm:$0x77]
      %v574 = vld [vmem:[%s2] sm:$0x7]
      %v575 = vld [vmem:[%s3] sm:$0x7]
      %577 = vset.pattern.permute.xlu0 0
      %578 = vperm.xlu0 %577, %v574
      %v579 = vpop.permute.xlu0 %578
      %v582 = vperm.slane %v572, 0
      %v583 = vperm.slane %v572, 4
      %v586 = vperm.slane %v582, 0
      %v587 = vperm.slane %v583, 0
      %v588 = vmul.f32 %v579, %v586
      %v589 = vmul.f32 %v579, %v587
      %590 = vset.pattern.permute.xlu0 1
      %591 = vperm.xlu0 %590, %v574
      %v592 = vpop.permute.xlu0 %591
      %v594 = vperm.slane %v572, 1
      %v595 = vperm.slane %v572, 5
      %v598 = vperm.slane %v594, 1
      %v599 = vperm.slane %v595, 1
      %v600 = vmul.f32 %v592, %v598
      %v601 = vmul.f32 %v592, %v599
      %v602 = vadd.f32 %v588, %v600
      %v603 = vadd.f32 %v589, %v601
      %604 = vset.pattern.permute.xlu0 2
      %605 = vperm.xlu0 %604, %v574
      %v606 = vpop.permute.xlu0 %605
      %v608 = vperm.slane %v572, 2
      %v609 = vperm.slane %v572, 6
      %v612 = vperm.slane %v608, 2
      %v613 = vperm.slane %v609, 2
      %v614 = vmul.f32 %v606, %v612
      %v615 = vmul.f32 %v606, %v613
      %v616 = vadd.f32 %v602, %v614
      %v617 = vadd.f32 %v603, %v615
      %619 = vset.pattern.permute.xlu0 0
      %620 = vperm.xlu0 %619, %v575
      %v621 = vpop.permute.xlu0 %620
      %v623 = vadd.f32 %v616, %v621
      %v624 = vadd.f32 %v617, %v621
      %v625 = vld [vmem:[%s4] sm:$0x7]
      %v626 = vld [vmem:[%s5] sm:$0x7]
      %628 = vset.pattern.permute.xlu0 0
      %629 = vperm.xlu0 %628, %v625
      %v630 = vpop.permute.xlu0 %629
      %v632 = vmul.f32 %v630, %v586
      %v633 = vmul.f32 %v630, %v587
      %634 = vset.pattern.permute.xlu0 1
      %635 = vperm.xlu0 %634, %v625
      %v636 = vpop.permute.xlu0 %635
      %v638 = vmul.f32 %v636, %v598
      %v639 = vmul.f32 %v636, %v599
      %v640 = vadd.f32 %v632, %v638
      %v641 = vadd.f32 %v633, %v639
      %642 = vset.pattern.permute.xlu0 2
      %643 = vperm.xlu0 %642, %v625
      %v644 = vpop.permute.xlu0 %643
      %v646 = vmul.f32 %v644, %v612
      %v647 = vmul.f32 %v644, %v613
      %v648 = vadd.f32 %v640, %v646
      %v649 = vadd.f32 %v641, %v647
      %651 = vset.pattern.permute.xlu0 0
      %652 = vperm.xlu0 %651, %v626
      %v653 = vpop.permute.xlu0 %652
      %v655 = vadd.f32 %v648, %v653
      %v656 = vadd.f32 %v649, %v653
      %v657 = vmul.f32 %v655, 0.5
      %v658 = vmul.f32 %v656, 0.5
      %v659 = vmul.f32 %v657, 1.442695
      %v660 = vpow.pop %v659
      %v661 = vmul.f32 %v658, 1.442695
      %v662 = vpow.pop %v661
      %664 = vst [vmem:[#allocation1] ss:$2 sm:$0xff] %v573
      %v665 = vld.sshfl [vmem:[#allocation1] sm:$0xff pattern:$0x75316420]
      %v666 = vld.sshfl [vmem:[#allocation1 + $0x8] sm:$0xff pattern:$0x75316420]
      %v669 = vmul.f32 %v660, %v665
      %v670 = vmul.f32 %v662, %v666
      %v671 = vadd.f32 %v623, %v669
      %v672 = vadd.f32 %v624, %v670
      %v673 = vld [vmem:[%s6] sm:$0x7]
      %v674 = vld [vmem:[%s7] sm:$0x7]
      %676 = vset.pattern.permute.xlu0 0
      %677 = vperm.xlu0 %676, %v673
      %v678 = vpop.permute.xlu0 %677
      %v680 = vperm.slane %v671, 0
      %v681 = vperm.slane %v672, 0
      %v682 = vmul.f32 %v678, %v680
      %v683 = vmul.f32 %v678, %v681
      %684 = vset.pattern.permute.xlu0 1
      %685 = vperm.xlu0 %684, %v673
      %v686 = vpop.permute.xlu0 %685
      %v688 = vperm.slane %v671, 1
      %v689 = vperm.slane %v672, 1
      %v690 = vmul.f32 %v686, %v688
      %v691 = vmul.f32 %v686, %v689
      %v692 = vadd.f32 %v682, %v690
      %v693 = vadd.f32 %v683, %v691
      %694 = vset.pattern.permute.xlu0 2
      %695 = vperm.xlu0 %694, %v673
      %v696 = vpop.permute.xlu0 %695
      %v698 = vperm.slane %v671, 2
      %v699 = vperm.slane %v672, 2
      %v700 = vmul.f32 %v696, %v698
      %v701 = vmul.f32 %v696, %v699
      %v702 = vadd.f32 %v692, %v700
      %v703 = vadd.f32 %v693, %v701
      %705 = vset.pattern.permute.xlu0 0
      %706 = vperm.xlu0 %705, %v674
      %v707 = vpop.permute.xlu0 %706
      %v709 = vadd.f32 %v702, %v707
      %v710 = vadd.f32 %v703, %v707
      %v711 = vxor.u32 %v709, 2147483648
      %v712 = vxor.u32 %v710, 2147483648
      %v713 = vmul.f32 %v711, 1.442695
      %v714 = vpow.pop %v713
      %v715 = vmul.f32 %v712, 1.442695
      %v716 = vpow.pop %v715
      %v717 = vadd.f32 %v714, 1.0
      %v718 = vadd.f32 %v716, 1.0
      %v719 = vrcp.pop %v717
      %v720 = vmul.f32 %v717, %v719
      %v721 = vsub.f32 1.0, %v720
      %v722 = vmul.f32 %v719, %v721
      %v723 = vadd.f32 %v719, %v722
      %vm724 = vweird.f32 %v717
      %vm725 = vweird.f32 %v719
      %vm726 = vmor %vm724, %vm725
      %v727 = vsel %vm726, %v719, %v723
      %v728 = vand.u32 2147483647, %v717
      %vm729 = vcmp.eq.f32.partialorder %v728, 8.507059e+37
      %v730 = vand.u32 %v717, 2147483648
      %v731 = vor.u32 1.1754944e-38, %v730
      %v732 = vsel %vm729, %v731, %v727
      %v733 = vmul.f32 1.0, %v732
      %v734 = vrcp.pop %v718
      %v735 = vmul.f32 %v718, %v734
      %v736 = vsub.f32 1.0, %v735
      %v737 = vmul.f32 %v734, %v736
      %v738 = vadd.f32 %v734, %v737
      %vm739 = vweird.f32 %v718
      %vm740 = vweird.f32 %v734
      %vm741 = vmor %vm739, %vm740
      %v742 = vsel %vm741, %v734, %v738
      %v743 = vand.u32 2147483647, %v718
      %vm744 = vcmp.eq.f32.partialorder %v743, 8.507059e+37
      %v745 = vand.u32 %v718, 2147483648
      %v746 = vor.u32 1.1754944e-38, %v745
      %v747 = vsel %vm744, %v746, %v742
      %v748 = vmul.f32 1.0, %v747
      %v751 = vrot.slane %v748, 4
      %vm752 = vcmask 1043456
      %v753 = vsel %vm752, %v733, %v751
      %755 = vst [vmem:[%s536] sm:$0x77] %v753
      %v758 = vrot.slane %v624, 4
      %v759 = vsel %vm752, %v623, %v758
      %761 = vst [vmem:[%s546] sm:$0x77] %v759
      %v764 = vrot.slane %v656, 4
      %v765 = vsel %vm752, %v655, %v764
      %767 = vst [vmem:[%s556] sm:$0x77] %v765
      %v768 = vsub.f32 %v572, %v753
      %v769 = vand.u32 2147483647, %v768
      %771 = vst [vmem:[#allocation1] ss:$2 sm:$0xff] %v769
      %v772 = vld.sshfl [vmem:[#allocation1] sm:$0xff pattern:$0x75316420]
      %v773 = vld.sshfl [vmem:[#allocation1 + $0x8] sm:$0xff pattern:$0x75316420]
      %vm776 = vcmask 1042432
      %v777 = vsel %vm776, %v772, 0.0
      %v778 = vsel %vm776, %v773, 0.0
      %v779 = vadd.f32 %v777, %v778
      %780 = vadd.xlane.f32.xlu0 %v779
      %v781 = vpop.xlane.xlu0 %780
      %v782 = vrot.slane %v781, 4
      %v783 = vadd.f32 %v781, %v782
      %v784 = vrot.slane %v783, 2
      %v785 = vadd.f32 %v783, %v784
      %v786 = vrot.slane %v785, 1
      %v787 = vadd.f32 %v785, %v786
      %s788 = vtos %v787
      %v789 = vadd.f32 %v655, 1.0
      %v790 = vadd.f32 %v656, 1.0
      %v791 = vmul.f32 %v623, %v623
      %v792 = vmul.f32 %v624, %v624
      %v793 = vsub.f32 %v789, %v791
      %v794 = vsub.f32 %v790, %v792
      %v795 = vmul.f32 %v660, %v660
      %v796 = vmul.f32 %v662, %v662
      %v797 = vsub.f32 %v793, %v795
      %v798 = vsub.f32 %v794, %v796
      %v799 = vmul.f32 %v797, -0.5
      %v800 = vmul.f32 %v798, -0.5
      %v801 = vsel %vm776, %v799, 0.0
      %v802 = vsel %vm776, %v800, 0.0
      %v803 = vadd.f32 %v801, %v802
      %804 = vadd.xlane.f32.xlu0 %v803
      %v805 = vpop.xlane.xlu0 %804
      %v806 = vrot.slane %v805, 4
      %v807 = vadd.f32 %v805, %v806
      %v808 = vrot.slane %v807, 2
      %v809 = vadd.f32 %v807, %v808
      %v810 = vrot.slane %v809, 1
      %v811 = vadd.f32 %v809, %v810
      %s812 = vtos %v811
      %v813 = vstv %s788
      %814 = vst [vmem:[%s564] sm:$0xff] %v813
      %v815 = vstv %s812
      %816 = vst [vmem:[%s571] sm:$0xff] %v815
      %s817 = smul.u32 2, %s29
      %p818 = scmp.lt.s32.totalorder %s28, 1
      %s819 = scalar_select %p818, %s28, 1
      %p820 = scmp.lt.s32.totalorder %s817, 1
      %s821 = scalar_select %p820, %s817, 1
      %s822 = smul.addr %s819, 2
      %s823 = sadd.s32 %s821, %s822
      %s824 = smul.addr %s823, 4
      %s825 = scalar_lea.vmem %s8, %s824
      %s826 = smul.u32 2, %s29
      %p827 = scmp.lt.s32.totalorder %s28, 1
      %s828 = scalar_select %p827, %s28, 1
      %p829 = scmp.lt.s32.totalorder %s826, 1
      %s830 = scalar_select %p829, %s826, 1
      %s831 = smul.addr %s828, 2
      %s832 = sadd.s32 %s830, %s831
      %s833 = smul.addr %s832, 4
      %s834 = scalar_lea.vmem %s9, %s833
      %s835 = smul.u32 2, %s29
      %p836 = scmp.lt.s32.totalorder %s28, 1
      %s837 = scalar_select %p836, %s28, 1
      %p838 = scmp.lt.s32.totalorder %s835, 1
      %s839 = scalar_select %p838, %s835, 1
      %s840 = smul.addr %s837, 2
      %s841 = sadd.s32 %s839, %s840
      %s842 = smul.addr %s841, 4
      %s843 = scalar_lea.vmem %s10, %s842
      %p844 = scmp.lt.s32.totalorder %s28, 1
      %s845 = scalar_select %p844, %s28, 1
      %p846 = scmp.lt.s32.totalorder %s29, 0
      %s847 = scalar_select %p846, %s29, 0
      %s848 = sadd.s32 %s847, %s845
      %s849 = smul.addr %s848, 8
      %s850 = scalar_lea.vmem %s11, %s849
      %p851 = scmp.lt.s32.totalorder %s28, 1
      %s852 = scalar_select %p851, %s28, 1
      %p853 = scmp.lt.s32.totalorder %s29, 0
      %s854 = scalar_select %p853, %s29, 0
      %s855 = sadd.s32 %s854, %s852
      %s856 = smul.addr %s855, 8
      %s857 = scalar_lea.vmem %s12, %s856
      // Predicated region
      $region53: #{vae_forward.1} parent=51 // pred_check
        %p858 = pneg %p238
      $region54: #{vae_forward.1} parent=51 // pred_check_branch
        %860 = sbr.rel (%p858) target = $region56
      $region55: #{vae_forward.1} parent=51 // pred_region
        %s861 = smul.u32 2, %s29
      $region56: #{vae_forward.1} parent=51 // pred_fallthru
        _
      // Predicated region
      $region57: #{vae_forward.1} parent=51 // pred_check
        %p862 = pneg %p266
      $region58: #{vae_forward.1} parent=51 // pred_check_branch
        %864 = sbr.rel (%p862) target = $region60
      $region59: #{vae_forward.1} parent=51 // pred_region
        %s865 = smul.u32 2, %s29
      $region60: #{vae_forward.1} parent=51 // pred_fallthru
        _
      // Predicated region
      $region61: #{vae_forward.1} parent=51 // pred_check
        %p866 = pneg %p294
      $region62: #{vae_forward.1} parent=51 // pred_check_branch
        %868 = sbr.rel (%p866) target = $region64
      $region63: #{vae_forward.1} parent=51 // pred_region
        %s869 = smul.u32 2, %s29
      $region64: #{vae_forward.1} parent=51 // pred_fallthru
        _
      // Predicated region
      $region65: #{vae_forward.1} parent=51 // pred_check
        %p870 = pneg %p322
      $region66: #{vae_forward.1} parent=51 // pred_check_branch
        %872 = sbr.rel (%p870) target = $region68
      $region67: #{vae_forward.1} parent=51 // pred_region
        _
      $region68: #{vae_forward.1} parent=51 // pred_fallthru
        _
      // Predicated region
      $region69: #{vae_forward.1} parent=51 // pred_check
        %p873 = pneg %p350
      $region70: #{vae_forward.1} parent=51 // pred_check_branch
        %875 = sbr.rel (%p873) target = $region72
      $region71: #{vae_forward.1} parent=51 // pred_region
        _
      $region72: #{vae_forward.1} parent=51 // pred_fallthru
        _
    $region52: #{vae_forward.1} parent=5 // pred_fallthru
      _
    %p876 = scmp.le.s32.totalorder 2, %s19
    // Predicated region
    $region73: #{vae_forward.1} parent=5 // pred_check
      %p877 = pneg %p876
    $region74: #{vae_forward.1} parent=5 // pred_check_branch
      %879 = sbr.rel (%p877) target = $region76
    $region75: #{vae_forward.1} parent=5 // pred_region
      %s880 = ssub.s32 %s19, 2
      // Predicated region
      $region77: #{vae_forward.1} parent=75 // pred_check
        %p881 = pneg %p244
      $region78: #{vae_forward.1} parent=75 // pred_check_branch
        %883 = sbr.rel (%p881) target = $region80
      $region79: #{vae_forward.1} parent=75 // pred_region
        %s884 = smul.u32 2, %s31
        %p885 = scmp.lt.s32.totalorder %s30, 1
        %s886 = scalar_select %p885, %s30, 1
        %p887 = scmp.lt.s32.totalorder %s884, 1
        %s888 = scalar_select %p887, %s884, 1
        %s889 = smul.addr %s886, 2
        %s890 = sadd.s32 %s888, %s889
        %s891 = smul.addr %s890, 4
        %s892 = scalar_lea.vmem %s8, %s891
      $region80: #{vae_forward.1} parent=75 // pred_fallthru
        _
      // Predicated region
      $region81: #{vae_forward.1} parent=75 // pred_check
        %p893 = pneg %p272
      $region82: #{vae_forward.1} parent=75 // pred_check_branch
        %895 = sbr.rel (%p893) target = $region84
      $region83: #{vae_forward.1} parent=75 // pred_region
        %s896 = smul.u32 2, %s31
        %p897 = scmp.lt.s32.totalorder %s30, 1
        %s898 = scalar_select %p897, %s30, 1
        %p899 = scmp.lt.s32.totalorder %s896, 1
        %s900 = scalar_select %p899, %s896, 1
        %s901 = smul.addr %s898, 2
        %s902 = sadd.s32 %s900, %s901
        %s903 = smul.addr %s902, 4
        %s904 = scalar_lea.vmem %s9, %s903
      $region84: #{vae_forward.1} parent=75 // pred_fallthru
        _
      // Predicated region
      $region85: #{vae_forward.1} parent=75 // pred_check
        %p905 = pneg %p300
      $region86: #{vae_forward.1} parent=75 // pred_check_branch
        %907 = sbr.rel (%p905) target = $region88
      $region87: #{vae_forward.1} parent=75 // pred_region
        %s908 = smul.u32 2, %s31
        %p909 = scmp.lt.s32.totalorder %s30, 1
        %s910 = scalar_select %p909, %s30, 1
        %p911 = scmp.lt.s32.totalorder %s908, 1
        %s912 = scalar_select %p911, %s908, 1
        %s913 = smul.addr %s910, 2
        %s914 = sadd.s32 %s912, %s913
        %s915 = smul.addr %s914, 4
        %s916 = scalar_lea.vmem %s10, %s915
      $region88: #{vae_forward.1} parent=75 // pred_fallthru
        _
      // Predicated region
      $region89: #{vae_forward.1} parent=75 // pred_check
        %p917 = pneg %p328
      $region90: #{vae_forward.1} parent=75 // pred_check_branch
        %919 = sbr.rel (%p917) target = $region92
      $region91: #{vae_forward.1} parent=75 // pred_region
        %p920 = scmp.lt.s32.totalorder %s30, 1
        %s921 = scalar_select %p920, %s30, 1
        %p922 = scmp.lt.s32.totalorder %s31, 0
        %s923 = scalar_select %p922, %s31, 0
        %s924 = sadd.s32 %s923, %s921
        %s925 = smul.addr %s924, 8
        %s926 = scalar_lea.vmem %s11, %s925
      $region92: #{vae_forward.1} parent=75 // pred_fallthru
        _
      // Predicated region
      $region93: #{vae_forward.1} parent=75 // pred_check
        %p927 = pneg %p356
      $region94: #{vae_forward.1} parent=75 // pred_check_branch
        %929 = sbr.rel (%p927) target = $region96
      $region95: #{vae_forward.1} parent=75 // pred_region
        %p930 = scmp.lt.s32.totalorder %s30, 1
        %s931 = scalar_select %p930, %s30, 1
        %p932 = scmp.lt.s32.totalorder %s31, 0
        %s933 = scalar_select %p932, %s31, 0
        %s934 = sadd.s32 %s933, %s931
        %s935 = smul.addr %s934, 8
        %s936 = scalar_lea.vmem %s12, %s935
      $region96: #{vae_forward.1} parent=75 // pred_fallthru
        _
    $region76: #{vae_forward.1} parent=5 // pred_fallthru
      _
  $region6: #{vae_forward.1} parent=0 // loop_footer
    %s23 = sadd.s32 1, %s19
  $region7: #{vae_forward.1} parent=0 // loop_footer_branch
    %18 = sbr.rel target = $region3
  $region8: #{vae_forward.1} parent=0 // loop_exit
    _

</llo_original>
